<compile_context>
chip_gen: v5e
topology: v5e:2x2
jax: 0.10.0
libtpu: 0.0.40
codegen_flags: <defaults>
</compile_context>

<pallas_src>
import jax
import jax.numpy as jnp
from jax.experimental import pallas as pl
from jax.experimental.pallas import tpu as pltpu


def mlp_kernel(x_ref, w1_ref, b1_ref, w2_ref, b2_ref, w3_ref, b3_ref, o_ref):
    # In-kernel bf16 cast of the x tile (cheap VPU op, hidden under the DMA).
    x = x_ref[...].astype(jnp.bfloat16)

    # Layer 1: bf16 MXU matmul, f32 accumulate, + bias, ReLU.
    h = jnp.dot(x, w1_ref[...], preferred_element_type=jnp.float32) + b1_ref[...]
    h = jnp.maximum(h, 0.0)

    # Layer 2: tiny f32 matmul (keeps precision; <1% of FLOPs).
    h = jnp.dot(h, w2_ref[...], preferred_element_type=jnp.float32) + b2_ref[...]
    h = jnp.maximum(h, 0.0)

    # Output layer, then 6*sigmoid(z) - 3 == 3*tanh(z/2).
    z = jnp.dot(h, w3_ref[...], preferred_element_type=jnp.float32) + b3_ref[...]
    o_ref[...] = (3.0 * jnp.tanh(0.5 * z)).astype(o_ref.dtype)


def _round_up(n, m):
    return ((n + m - 1) // m) * m


def _pad2(a, rows, cols):
    r, c = a.shape
    return jnp.pad(a, ((0, rows - r), (0, cols - c)))


def _vmem_limit_bytes():
    # ~48 MiB on v7x (64 MiB physical), ~96 MiB on v5e/v6e (128 MiB physical).
    try:
        cap = pltpu.get_tpu_info().vmem_capacity_bytes
    except Exception:
        cap = 64 << 20  # conservative fallback, valid on every generation
    return min(cap * 3 // 4, 96 << 20)


def _choose_tile_batch(B, tile_batch):
    # >=2 roughly balanced grid steps (so the "parallel" batch axis actually
    # uses both TensorCores on v7x), TB a multiple of 8, TB <= tile_batch.
    n_steps = max(2, pl.cdiv(B, tile_batch))
    tb = _round_up(pl.cdiv(B, n_steps), 8)
    return max(8, min(tb, _round_up(B, 8)))


def depth_to_height_forward(x, params, *, tile_batch=1024):
    """x: (B, Din) float32/bfloat16; params: [(w1,b1),(w2,b2),(w3,b3)],
    w: (in, out), b: (1, out).  Returns (B, Dout) float32."""
    (w1, b1), (w2, b2), (w3, b3) = params
    B, Din = x.shape
    H1, H2, Dout = w1.shape[1], w2.shape[1], w3.shape[1]

    # Hidden / output feature dims padded to 128 lanes (weights are tiny and
    # padded once; x itself is NOT padded or pre-cast).  Do not pad beyond 128:
    # the kernel is HBM-bound, wider tiles only add bytes.
    H1_p = _round_up(H1, 128)
    H2_p = _round_up(H2, 128)
    Dout_p = _round_up(Dout, 128)

    # Layer-1 weight in bf16 (contraction rows stay exactly Din); the rest f32.
    w1p = _pad2(w1, Din, H1_p).astype(jnp.bfloat16)
    w2p = _pad2(w2, H1_p, H2_p).astype(jnp.float32)
    w3p = _pad2(w3, H2_p, Dout_p).astype(jnp.float32)
    b1p = _pad2(b1, 1, H1_p).astype(jnp.float32)
    b2p = _pad2(b2, 1, H2_p).astype(jnp.float32)
    b3p = _pad2(b3, 1, Dout_p).astype(jnp.float32)

    TB = _choose_tile_batch(B, tile_batch)
    grid = (pl.cdiv(B, TB),)

    def resident(a):  # full-array block, constant index -> stays in VMEM across steps
        return pl.BlockSpec(a.shape, lambda b: (0, 0))

    flops = 2 * B * (Din * H1_p + H1_p * H2_p + H2_p * Dout_p)
    bytes_accessed = (
        x.size * x.dtype.itemsize
        + w1p.size * 2
        + (w2p.size + w3p.size + b1p.size + b2p.size + b3p.size) * 4
        + B * Dout_p * 4
    )

    out_p = pl.pallas_call(
        mlp_kernel,
        out_shape=jax.ShapeDtypeStruct((B, Dout_p), jnp.float32),
        grid=grid,
        in_specs=[
            # Full last dim == array dim, so no 128-multiple requirement on Din.
            pl.BlockSpec((TB, Din), lambda b: (b, 0)),
            resident(w1p), resident(b1p),
            resident(w2p), resident(b2p),
            resident(w3p), resident(b3p),
        ],
        out_specs=pl.BlockSpec((TB, Dout_p), lambda b: (b, 0)),
        compiler_params=pltpu.CompilerParams(
            dimension_semantics=("parallel",),
            vmem_limit_bytes=_vmem_limit_bytes(),
        ),
        cost_estimate=pl.CostEstimate(
            flops=int(flops),
            transcendentals=int(B * Dout_p),
            bytes_accessed=int(bytes_accessed),
        ),
    )(x, w1p, b1p, w2p, b2p, w3p, b3p)

    # Strip the lane padding only (no batch padding was added).
    return out_p[:, :Dout]


def init_linear(key, fan_in, fan_out):
    # Deterministic init mimicking nn.Linear's uniform(-1/sqrt(fan_in), 1/sqrt(fan_in)).
    kw, kb = jax.random.split(key)
    bound = 1.0 / jnp.sqrt(jnp.float32(fan_in))
    w = jax.random.uniform(kw, (fan_in, fan_out), jnp.float32, -bound, bound)
    b = jax.random.uniform(kb, (1, fan_out), jnp.float32, -bound, bound)
    return w, b


def reference_forward(x, params):
    # Same math as the kernel in plain JAX: layer 1 with bf16-rounded operands
    # and f32 accumulation, layers 2/3 in f32.
    def bf(a):
        return a.astype(jnp.bfloat16).astype(jnp.float32)

    (w1, b1), (w2, b2), (w3, b3) = params
    h = jnp.maximum(bf(x) @ bf(w1) + b1, 0.0)
    h = jnp.maximum(h @ w2 + b2, 0.0)
    z = h @ w3 + b3
    return 6.0 * jax.nn.sigmoid(z) - 3.0


if __name__ == "__main__":
    # Small stand-ins for the real module (input_dim = 4096 + 12, output_dim = 3).
    # Shapes chosen to exercise: non-128-aligned Din, a partial last batch tile
    # (B % TB != 0), and a >=2-step batch grid.
    batch = 200
    input_dim = 200          # stand-in for 4108 (non-multiple of 128)
    hidden_dims = [64, 32]
    output_dim = 3

    key = jax.random.PRNGKey(0)
    kx, k1, k2, k3 = jax.random.split(key, 4)

    x = jax.random.normal(kx, (batch, input_dim), jnp.float32)
    params = [
        init_linear(k1, input_dim, hidden_dims[0]),
        init_linear(k2, hidden_dims[0], hidden_dims[1]),
        init_linear(k3, hidden_dims[1], output_dim),
    ]

    out = depth_to_height_forward(x, params, tile_batch=128)  # -> TB=104, grid=(2,)
    out = jax.block_until_ready(out)

    ref = reference_forward(x, params)
    assert out.shape == (batch, output_dim)
    assert jnp.allclose(out, ref, atol=1e-2, rtol=1e-2), float(jnp.max(jnp.abs(out - ref)))

    print("KERNEL_OK")
</pallas_src>

<mosaic_0001>
module attributes {stable_mosaic.version = 11 : i64} {
  func.func @mlp_kernel(%arg0: i32, %arg1: memref<104x200xf32, #tpu.memory_space<vmem>>, %arg2: memref<200x128xbf16, #tpu.memory_space<vmem>>, %arg3: memref<1x128xf32, #tpu.memory_space<vmem>>, %arg4: memref<128x128xf32, #tpu.memory_space<vmem>>, %arg5: memref<1x128xf32, #tpu.memory_space<vmem>>, %arg6: memref<128x128xf32, #tpu.memory_space<vmem>>, %arg7: memref<1x128xf32, #tpu.memory_space<vmem>>, %arg8: memref<104x128xf32, #tpu.memory_space<vmem>>) attributes {dimension_semantics = [#tpu.dimension_semantics<parallel>], iteration_bounds = array<i64: 2>, scalar_prefetch = 0 : i64, scratch_operands = 0 : i64, tpu.core_type = #tpu.core_type<tc>, window_params = [{transform_indices = @transform_0, window_bounds = array<i64: 104, 200>}, {pipeline_mode = #tpu.pipeline_mode<synchronous>, transform_indices = @transform_1, window_bounds = array<i64: 200, 128>}, {pipeline_mode = #tpu.pipeline_mode<synchronous>, transform_indices = @transform_2, window_bounds = array<i64: 1, 128>}, {pipeline_mode = #tpu.pipeline_mode<synchronous>, transform_indices = @transform_3, window_bounds = array<i64: 128, 128>}, {pipeline_mode = #tpu.pipeline_mode<synchronous>, transform_indices = @transform_4, window_bounds = array<i64: 1, 128>}, {pipeline_mode = #tpu.pipeline_mode<synchronous>, transform_indices = @transform_5, window_bounds = array<i64: 128, 128>}, {pipeline_mode = #tpu.pipeline_mode<synchronous>, transform_indices = @transform_6, window_bounds = array<i64: 1, 128>}, {transform_indices = @transform_7, window_bounds = array<i64: 104, 128>}]} {
    %c0 = arith.constant 0 : index
    %c0_0 = arith.constant 0 : index
    %0 = vector.load %arg1[%c0, %c0_0] : memref<104x200xf32, #tpu.memory_space<vmem>>, vector<104x200xf32>
    %1 = arith.truncf %0 : vector<104x200xf32> to vector<104x200xbf16>
    %c0_1 = arith.constant 0 : index
    %c0_2 = arith.constant 0 : index
    %2 = vector.load %arg2[%c0_1, %c0_2] : memref<200x128xbf16, #tpu.memory_space<vmem>>, vector<200x128xbf16>
    %cst = arith.constant dense<0.000000e+00> : vector<104x128xf32>
    %3 = tpu.matmul %1, %2, %cst {dimension_numbers = #tpu.dot_dimension_numbers<[1], [0], [0], [1], [0, 0, 1, 1], [], []>} : vector<104x200xbf16>, vector<200x128xbf16>, vector<104x128xf32> -> vector<104x128xf32>
    %c0_3 = arith.constant 0 : index
    %c0_4 = arith.constant 0 : index
    %4 = vector.load %arg3[%c0_3, %c0_4] : memref<1x128xf32, #tpu.memory_space<vmem>>, vector<1x128xf32>
    %5 = vector.broadcast %4 : vector<1x128xf32> to vector<104x128xf32>
    %6 = arith.addf %3, %5 : vector<104x128xf32>
    %cst_5 = arith.constant 0.000000e+00 : f32
    %7 = vector.broadcast %cst_5 : f32 to vector<104x128xf32>
    %8 = arith.maximumf %6, %7 : vector<104x128xf32>
    %c0_6 = arith.constant 0 : index
    %c0_7 = arith.constant 0 : index
    %9 = vector.load %arg4[%c0_6, %c0_7] : memref<128x128xf32, #tpu.memory_space<vmem>>, vector<128x128xf32>
    %cst_8 = arith.constant dense<0.000000e+00> : vector<104x128xf32>
    %10 = tpu.matmul %8, %9, %cst_8 {dimension_numbers = #tpu.dot_dimension_numbers<[1], [0], [0], [1], [0, 0, 1, 1], [], []>} : vector<104x128xf32>, vector<128x128xf32>, vector<104x128xf32> -> vector<104x128xf32>
    %c0_9 = arith.constant 0 : index
    %c0_10 = arith.constant 0 : index
    %11 = vector.load %arg5[%c0_9, %c0_10] : memref<1x128xf32, #tpu.memory_space<vmem>>, vector<1x128xf32>
    %12 = vector.broadcast %11 : vector<1x128xf32> to vector<104x128xf32>
    %13 = arith.addf %10, %12 : vector<104x128xf32>
    %cst_11 = arith.constant 0.000000e+00 : f32
    %14 = vector.broadcast %cst_11 : f32 to vector<104x128xf32>
    %15 = arith.maximumf %13, %14 : vector<104x128xf32>
    %c0_12 = arith.constant 0 : index
    %c0_13 = arith.constant 0 : index
    %16 = vector.load %arg6[%c0_12, %c0_13] : memref<128x128xf32, #tpu.memory_space<vmem>>, vector<128x128xf32>
    %cst_14 = arith.constant dense<0.000000e+00> : vector<104x128xf32>
    %17 = tpu.matmul %15, %16, %cst_14 {dimension_numbers = #tpu.dot_dimension_numbers<[1], [0], [0], [1], [0, 0, 1, 1], [], []>} : vector<104x128xf32>, vector<128x128xf32>, vector<104x128xf32> -> vector<104x128xf32>
    %c0_15 = arith.constant 0 : index
    %c0_16 = arith.constant 0 : index
    %18 = vector.load %arg7[%c0_15, %c0_16] : memref<1x128xf32, #tpu.memory_space<vmem>>, vector<1x128xf32>
    %19 = vector.broadcast %18 : vector<1x128xf32> to vector<104x128xf32>
    %20 = arith.addf %17, %19 : vector<104x128xf32>
    %cst_17 = arith.constant 5.000000e-01 : f32
    %21 = vector.broadcast %cst_17 : f32 to vector<104x128xf32>
    %22 = arith.mulf %21, %20 : vector<104x128xf32>
    %23 = math.tanh %22 : vector<104x128xf32>
    %cst_18 = arith.constant 3.000000e+00 : f32
    %24 = vector.broadcast %cst_18 : f32 to vector<104x128xf32>
    %25 = arith.mulf %24, %23 : vector<104x128xf32>
    %c0_19 = arith.constant 0 : index
    %c0_20 = arith.constant 0 : index
    %26 = vector.load %arg8[%c0_19, %c0_20] : memref<104x128xf32, #tpu.memory_space<vmem>>, vector<104x128xf32>
    tpu.vector_store %arg8[%c0_19, %c0_20], %25 {strides = array<i32>} : memref<104x128xf32, #tpu.memory_space<vmem>>, vector<104x128xf32>,
    return
  }
  func.func @transform_0(%arg0: i32) -> (i32, i32) {
    %c0_i32 = arith.constant 0 : i32
    %c0_i32_0 = arith.constant 0 : i32
    return %arg0, %c0_i32 : i32, i32
  }
  func.func @transform_1(%arg0: i32) -> (i32, i32) {
    %c0_i32 = arith.constant 0 : i32
    %c0_i32_0 = arith.constant 0 : i32
    %c0_i32_1 = arith.constant 0 : i32
    return %c0_i32, %c0_i32_0 : i32, i32
  }
  func.func @transform_2(%arg0: i32) -> (i32, i32) {
    %c0_i32 = arith.constant 0 : i32
    %c0_i32_0 = arith.constant 0 : i32
    %c0_i32_1 = arith.constant 0 : i32
    return %c0_i32, %c0_i32_0 : i32, i32
  }
  func.func @transform_3(%arg0: i32) -> (i32, i32) {
    %c0_i32 = arith.constant 0 : i32
    %c0_i32_0 = arith.constant 0 : i32
    %c0_i32_1 = arith.constant 0 : i32
    return %c0_i32, %c0_i32_0 : i32, i32
  }
  func.func @transform_4(%arg0: i32) -> (i32, i32) {
    %c0_i32 = arith.constant 0 : i32
    %c0_i32_0 = arith.constant 0 : i32
    %c0_i32_1 = arith.constant 0 : i32
    return %c0_i32, %c0_i32_0 : i32, i32
  }
  func.func @transform_5(%arg0: i32) -> (i32, i32) {
    %c0_i32 = arith.constant 0 : i32
    %c0_i32_0 = arith.constant 0 : i32
    %c0_i32_1 = arith.constant 0 : i32
    return %c0_i32, %c0_i32_0 : i32, i32
  }
  func.func @transform_6(%arg0: i32) -> (i32, i32) {
    %c0_i32 = arith.constant 0 : i32
    %c0_i32_0 = arith.constant 0 : i32
    %c0_i32_1 = arith.constant 0 : i32
    return %c0_i32, %c0_i32_0 : i32, i32
  }
  func.func @transform_7(%arg0: i32) -> (i32, i32) {
    %c0_i32 = arith.constant 0 : i32
    %c0_i32_0 = arith.constant 0 : i32
    return %arg0, %c0_i32 : i32, i32
  }
}

</mosaic_0001>

<llo_original>
// kernel: tpu_custom_call.1
$region0: #{tpu_custom_call.1}
  #allocation0 [shape = 'u32[]', space=smem, size = 0x4, offset = 0x4, fixed_abs, tag = 'smem constant byte address 0x4 - core index']
  #allocation1 [shape = 'u32[72,128]{1,0:T(1,128)}', space=vmem, size = 0x9000, scoped, tag = 'internal scratch']
  %s0 = inlined_call_operand.hbm [shape: f32[200,200], index: 0, kind: input, shape index: {}]
  %s1 = inlined_call_operand.hbm [shape: bf16[200,128], index: 1, kind: input, shape index: {}]
  %s2 = inlined_call_operand.vmem [shape: f32[1,128], index: 2, kind: input, shape index: {}]
  %s3 = inlined_call_operand.hbm [shape: f32[128,128], index: 3, kind: input, shape index: {}]
  %s4 = inlined_call_operand.vmem [shape: f32[1,128], index: 4, kind: input, shape index: {}]
  %s5 = inlined_call_operand.hbm [shape: f32[128,128], index: 5, kind: input, shape index: {}]
  %s6 = inlined_call_operand.vmem [shape: f32[1,128], index: 6, kind: input, shape index: {}]
  %s7 = inlined_call_operand.hbm [shape: f32[200,128], index: 7, kind: output, shape index: {}]
  %s8 = sld [smem:[#allocation0]]
  $region77: #{tpu_custom_call.1} parent=0
    _
  %s10 = ssub.s32 1, %s8
  %s11 = scalar_select 0, %s10, %s8
  $region1: #{tpu_custom_call.1} parent=0
    #allocation2 [shape = 'u8[212992]{0}', space=vmem, size = 0x34000, scoped, tag = 'input window, operand 0']
    #allocation3 [shape = 's32[2]{0}', space=sflag, size = 0x8, scoped, tag = 'scoped memory for tpu_custom_call.1']
    #allocation4 [shape = 's32[2]{0}', space=sflag, size = 0x8, scoped, tag = 'scoped memory for tpu_custom_call.1']
    #allocation5 [shape = 'u8[51200]{0}', space=vmem, size = 0xc800, scoped, tag = 'input window, operand 1, single buffered']
    #allocation6 [shape = 's32[1]{0}', space=sflag, size = 0x4, scoped, tag = 'scoped memory for tpu_custom_call.1']
    #allocation7 [shape = 'u8[65536]{0}', space=vmem, size = 0x10000, scoped, tag = 'input window, operand 3, single buffered']
    #allocation8 [shape = 'u8[65536]{0}', space=vmem, size = 0x10000, scoped, tag = 'input window, operand 5, single buffered']
    #allocation9 [shape = 's32[1]{0}', space=sflag, size = 0x4, scoped, tag = 'scoped memory for tpu_custom_call.1']
    #allocation10 [shape = 'u8[106496]{0}', space=vmem, size = 0x1a000, scoped, tag = 'output window, operand 0']
    %12 = vsyncpa [#allocation3], 0
    %s13 = scalar_lea.sflag [#allocation3], 1
    %14 = vsyncpa %s13, 0
    %15 = vsyncpa [#allocation6], 0
    %16 = vsyncpa [#allocation9], 0
    %17 = vsyncpa [#allocation4], 0
    %s18 = scalar_lea.sflag [#allocation4], 1
    %19 = vsyncpa %s18, 0
    loop: start=0, step=1, limit=4
    $region2: #{tpu_custom_call.1} parent=1 // loop_pre_header
      _
    $region3: #{tpu_custom_call.1} parent=1 // loop_header
      %s21 = sphi 0, %s25
      %p22 = scmp.ge.s32.totalorder %s21, 4
      %s31 = sphi 0, %s33
      %s34 = sphi 0, %s31
      %s35 = sphi 0, %s34
      %s51 = sphi 0, %s35
      %s55 = sphi 0, %s55
      %s57 = sphi 0, %s55
      %s58 = sphi 0, %s57
      %s72 = sphi 0, %s58
      %s76 = sphi 0, %s76
      %s78 = sphi 0, %s76
      %s79 = sphi 0, %s78
      %s93 = sphi 0, %s79
      %s97 = sphi 0, %s97
      %s99 = sphi 0, %s97
      %s100 = sphi 0, %s99
      %s114 = sphi 0, %s100
      %s118 = sphi 0, %s118
      %s120 = sphi 0, %s118
      %s121 = sphi 0, %s120
      %s135 = sphi 0, %s121
      %s139 = sphi 0, %s139
      %s141 = sphi 0, %s139
      %s142 = sphi 0, %s141
      %s156 = sphi 0, %s142
      %s160 = sphi 0, %s160
      %s162 = sphi 0, %s160
      %s163 = sphi 0, %s162
      %s177 = sphi 0, %s163
      %s183 = sphi 0, %s185
      %s186 = sphi 0, %s183
      %s187 = sphi 0, %s186
      %s203 = sphi 0, %s187
    $region4: #{tpu_custom_call.1} parent=1 // loop_header_branch
      %24 = sbr.rel (%p22) target = $region8
    $region5: #{tpu_custom_call.1} parent=1 // loop_body
      %s26 = ssub.s32 %s21, 1
      %s27 = ssub.s32 %s21, 2
      %s28 = sadd.s32 %s21, 1
      %s29 = ssub.s32 %s21, %s28
      %p30 = scmp.eq.s32.totalorder %s29, 0
      %s32 = sadd.s32 %s31, 1
      %s33 = scalar_select %p30, %s31, %s32
      %p36 = pneg %p30
      %p37 = scmp.eq.s32.totalorder %s21, 1
      %p38 = por %p36, %p37
      %p39 = scmp.ne.s32.totalorder %s31, %s34
      %p40 = scmp.eq.s32.totalorder %s21, 0
      %p41 = por %p39, %p40
      %p42 = scmp.ne.s32.totalorder %s31, %s34
      %p43 = scmp.eq.s32.totalorder %s26, 1
      %p44 = por %p42, %p43
      %p45 = scmp.ne.s32.totalorder %s34, %s35
      %p46 = scmp.eq.s32.totalorder %s26, 0
      %p47 = por %p45, %p46
      %p48 = scmp.ne.s32.totalorder %s34, %s35
      %p49 = scmp.eq.s32.totalorder %s27, 1
      %p50 = por %p48, %p49
      %p52 = scmp.ne.s32.totalorder %s35, %s51
      %p53 = scmp.eq.s32.totalorder %s27, 0
      %p54 = por %p52, %p53
      %s56 = sadd.s32 %s55, 1
      %p59 = scmp.eq.s32.totalorder %s21, 1
      %p60 = scmp.ne.s32.totalorder %s55, %s57
      %p61 = scmp.eq.s32.totalorder %s21, 0
      %p62 = por %p60, %p61
      %p63 = scmp.ne.s32.totalorder %s55, %s57
      %p64 = scmp.eq.s32.totalorder %s26, 1
      %p65 = por %p63, %p64
      %p66 = scmp.ne.s32.totalorder %s57, %s58
      %p67 = scmp.eq.s32.totalorder %s26, 0
      %p68 = por %p66, %p67
      %p69 = scmp.ne.s32.totalorder %s57, %s58
      %p70 = scmp.eq.s32.totalorder %s27, 1
      %p71 = por %p69, %p70
      %p73 = scmp.ne.s32.totalorder %s58, %s72
      %p74 = scmp.eq.s32.totalorder %s27, 0
      %p75 = por %p73, %p74
      %s77 = sadd.s32 %s76, 1
      %p80 = scmp.eq.s32.totalorder %s21, 1
      %p81 = scmp.ne.s32.totalorder %s76, %s78
      %p82 = scmp.eq.s32.totalorder %s21, 0
      %p83 = por %p81, %p82
      %p84 = scmp.ne.s32.totalorder %s76, %s78
      %p85 = scmp.eq.s32.totalorder %s26, 1
      %p86 = por %p84, %p85
      %p87 = scmp.ne.s32.totalorder %s78, %s79
      %p88 = scmp.eq.s32.totalorder %s26, 0
      %p89 = por %p87, %p88
      %p90 = scmp.ne.s32.totalorder %s78, %s79
      %p91 = scmp.eq.s32.totalorder %s27, 1
      %p92 = por %p90, %p91
      %p94 = scmp.ne.s32.totalorder %s79, %s93
      %p95 = scmp.eq.s32.totalorder %s27, 0
      %p96 = por %p94, %p95
      %s98 = sadd.s32 %s97, 1
      %p101 = scmp.eq.s32.totalorder %s21, 1
      %p102 = scmp.ne.s32.totalorder %s97, %s99
      %p103 = scmp.eq.s32.totalorder %s21, 0
      %p104 = por %p102, %p103
      %p105 = scmp.ne.s32.totalorder %s97, %s99
      %p106 = scmp.eq.s32.totalorder %s26, 1
      %p107 = por %p105, %p106
      %p108 = scmp.ne.s32.totalorder %s99, %s100
      %p109 = scmp.eq.s32.totalorder %s26, 0
      %p110 = por %p108, %p109
      %p111 = scmp.ne.s32.totalorder %s99, %s100
      %p112 = scmp.eq.s32.totalorder %s27, 1
      %p113 = por %p111, %p112
      %p115 = scmp.ne.s32.totalorder %s100, %s114
      %p116 = scmp.eq.s32.totalorder %s27, 0
      %p117 = por %p115, %p116
      %s119 = sadd.s32 %s118, 1
      %p122 = scmp.eq.s32.totalorder %s21, 1
      %p123 = scmp.ne.s32.totalorder %s118, %s120
      %p124 = scmp.eq.s32.totalorder %s21, 0
      %p125 = por %p123, %p124
      %p126 = scmp.ne.s32.totalorder %s118, %s120
      %p127 = scmp.eq.s32.totalorder %s26, 1
      %p128 = por %p126, %p127
      %p129 = scmp.ne.s32.totalorder %s120, %s121
      %p130 = scmp.eq.s32.totalorder %s26, 0
      %p131 = por %p129, %p130
      %p132 = scmp.ne.s32.totalorder %s120, %s121
      %p133 = scmp.eq.s32.totalorder %s27, 1
      %p134 = por %p132, %p133
      %p136 = scmp.ne.s32.totalorder %s121, %s135
      %p137 = scmp.eq.s32.totalorder %s27, 0
      %p138 = por %p136, %p137
      %s140 = sadd.s32 %s139, 1
      %p143 = scmp.eq.s32.totalorder %s21, 1
      %p144 = scmp.ne.s32.totalorder %s139, %s141
      %p145 = scmp.eq.s32.totalorder %s21, 0
      %p146 = por %p144, %p145
      %p147 = scmp.ne.s32.totalorder %s139, %s141
      %p148 = scmp.eq.s32.totalorder %s26, 1
      %p149 = por %p147, %p148
      %p150 = scmp.ne.s32.totalorder %s141, %s142
      %p151 = scmp.eq.s32.totalorder %s26, 0
      %p152 = por %p150, %p151
      %p153 = scmp.ne.s32.totalorder %s141, %s142
      %p154 = scmp.eq.s32.totalorder %s27, 1
      %p155 = por %p153, %p154
      %p157 = scmp.ne.s32.totalorder %s142, %s156
      %p158 = scmp.eq.s32.totalorder %s27, 0
      %p159 = por %p157, %p158
      %s161 = sadd.s32 %s160, 1
      %p164 = scmp.eq.s32.totalorder %s21, 1
      %p165 = scmp.ne.s32.totalorder %s160, %s162
      %p166 = scmp.eq.s32.totalorder %s21, 0
      %p167 = por %p165, %p166
      %p168 = scmp.ne.s32.totalorder %s160, %s162
      %p169 = scmp.eq.s32.totalorder %s26, 1
      %p170 = por %p168, %p169
      %p171 = scmp.ne.s32.totalorder %s162, %s163
      %p172 = scmp.eq.s32.totalorder %s26, 0
      %p173 = por %p171, %p172
      %p174 = scmp.ne.s32.totalorder %s162, %s163
      %p175 = scmp.eq.s32.totalorder %s27, 1
      %p176 = por %p174, %p175
      %p178 = scmp.ne.s32.totalorder %s163, %s177
      %p179 = scmp.eq.s32.totalorder %s27, 0
      %p180 = por %p178, %p179
      %s181 = ssub.s32 %s21, %s28
      %p182 = scmp.eq.s32.totalorder %s181, 0
      %s184 = sadd.s32 %s183, 1
      %s185 = scalar_select %p182, %s183, %s184
      %p188 = pneg %p182
      %p189 = scmp.eq.s32.totalorder %s21, 1
      %p190 = por %p188, %p189
      %p191 = scmp.ne.s32.totalorder %s183, %s186
      %p192 = scmp.eq.s32.totalorder %s21, 0
      %p193 = por %p191, %p192
      %p194 = scmp.ne.s32.totalorder %s183, %s186
      %p195 = scmp.eq.s32.totalorder %s26, 1
      %p196 = por %p194, %p195
      %p197 = scmp.ne.s32.totalorder %s186, %s187
      %p198 = scmp.eq.s32.totalorder %s26, 0
      %p199 = por %p197, %p198
      %p200 = scmp.ne.s32.totalorder %s186, %s187
      %p201 = scmp.eq.s32.totalorder %s27, 1
      %p202 = por %p200, %p201
      %p204 = scmp.ne.s32.totalorder %s187, %s203
      %p205 = scmp.eq.s32.totalorder %s27, 0
      %p206 = por %p204, %p205
      %p207 = scmp.le.s32.totalorder 1, %s21
      %p208 = scmp.lt.s32.totalorder %s21, 3
      %p209 = pnand %p207, %p208
      %p210 = pneg %p209
      // Predicated region
      $region9: #{tpu_custom_call.1} parent=5 // pred_check
        _
      $region10: #{tpu_custom_call.1} parent=5 // pred_check_branch
        %212 = sbr.rel (%p209) target = $region12
      $region11: #{tpu_custom_call.1} parent=5 // pred_region
        %s213 = ssub.s32 %s21, 1
        // Predicated region
        $region13: #{tpu_custom_call.1} parent=11 // pred_check
          %p214 = pneg %p68
        $region14: #{tpu_custom_call.1} parent=11 // pred_check_branch
          %216 = sbr.rel (%p214) target = $region16
        $region15: #{tpu_custom_call.1} parent=11 // pred_region
          %218 = vsyncadd [#allocation6], 0
          %s219 = sshll.u32 %s1, 4
          %s220 = int_to_ptr.hbm [resolvable:$true] %s219
          %s221 = sshll.u32 [#allocation5], 4
          %s222 = int_to_ptr.vmem [resolvable:$true] %s221
          %227 = dma.hbm_to_vmem [thread:$0]  %s220, 1600, %s222, [#allocation6], 64, 64, 4
        $region16: #{tpu_custom_call.1} parent=11 // pred_fallthru
          _
        // Predicated region
        $region17: #{tpu_custom_call.1} parent=11 // pred_check
          %p228 = pneg %p89
        $region18: #{tpu_custom_call.1} parent=11 // pred_check_branch
          %230 = sbr.rel (%p228) target = $region20
        $region19: #{tpu_custom_call.1} parent=11 // pred_region
          _
        $region20: #{tpu_custom_call.1} parent=11 // pred_fallthru
          _
        // Predicated region
        $region21: #{tpu_custom_call.1} parent=11 // pred_check
          %p231 = pneg %p110
        $region22: #{tpu_custom_call.1} parent=11 // pred_check_branch
          %233 = sbr.rel (%p231) target = $region24
        $region23: #{tpu_custom_call.1} parent=11 // pred_region
          %235 = vsyncadd [#allocation6], 0
          %s236 = sshll.u32 %s3, 4
          %s237 = int_to_ptr.hbm [resolvable:$true] %s236
          %s238 = sshll.u32 [#allocation7], 4
          %s239 = int_to_ptr.vmem [resolvable:$true] %s238
          %244 = dma.hbm_to_vmem [thread:$0]  %s237, 2048, %s239, [#allocation6], 128, 128, 8
        $region24: #{tpu_custom_call.1} parent=11 // pred_fallthru
          _
        // Predicated region
        $region25: #{tpu_custom_call.1} parent=11 // pred_check
          %p245 = pneg %p131
        $region26: #{tpu_custom_call.1} parent=11 // pred_check_branch
          %247 = sbr.rel (%p245) target = $region28
        $region27: #{tpu_custom_call.1} parent=11 // pred_region
          _
        $region28: #{tpu_custom_call.1} parent=11 // pred_fallthru
          _
        // Predicated region
        $region29: #{tpu_custom_call.1} parent=11 // pred_check
          %p248 = pneg %p152
        $region30: #{tpu_custom_call.1} parent=11 // pred_check_branch
          %250 = sbr.rel (%p248) target = $region32
        $region31: #{tpu_custom_call.1} parent=11 // pred_region
          %252 = vsyncadd [#allocation9], 0
          %s253 = sshll.u32 %s5, 4
          %s254 = int_to_ptr.hbm [resolvable:$true] %s253
          %s255 = sshll.u32 [#allocation8], 4
          %s256 = int_to_ptr.vmem [resolvable:$true] %s255
          %261 = dma.hbm_to_vmem [thread:$0]  %s254, 2048, %s256, [#allocation9], 128, 128, 8
        $region32: #{tpu_custom_call.1} parent=11 // pred_fallthru
          _
        // Predicated region
        $region33: #{tpu_custom_call.1} parent=11 // pred_check
          %p262 = pneg %p173
        $region34: #{tpu_custom_call.1} parent=11 // pred_check_branch
          %264 = sbr.rel (%p262) target = $region36
        $region35: #{tpu_custom_call.1} parent=11 // pred_region
          _
        $region36: #{tpu_custom_call.1} parent=11 // pred_fallthru
          _
      $region12: #{tpu_custom_call.1} parent=5 // pred_fallthru
        _
      %p265 = scmp.lt.s32.totalorder %s21, 2
      // Predicated region
      $region37: #{tpu_custom_call.1} parent=5 // pred_check
        %p266 = pneg %p265
      $region38: #{tpu_custom_call.1} parent=5 // pred_check_branch
        %268 = sbr.rel (%p266) target = $region40
      $region39: #{tpu_custom_call.1} parent=5 // pred_region
        // Predicated region
        $region41: #{tpu_custom_call.1} parent=39 // pred_check
          %p269 = pneg %p41
        $region42: #{tpu_custom_call.1} parent=39 // pred_check_branch
          %271 = sbr.rel (%p269) target = $region44
        $region43: #{tpu_custom_call.1} parent=39 // pred_region
          %s272 = sand.u32 %s31, 1
          %s273 = scalar_lea.sflag [#allocation3], %s272
          %s274 = sand.u32 %s31, 1
          %s275 = smul.addr %s274, 208
          %s276 = scalar_lea.vmem [#allocation2], %s275
          %s277 = smul.u32 13, %s21
          %s278 = ssub.s32 25, %s277
          %p279 = scmp.lt.s32.totalorder %s278, 13
          %s280 = scalar_select %p279, %s278, 13
          %s281 = smul.u32 8, %s280
          %s282 = smul.u32 %s281, 2
          %s283 = ssub.s32 208, %s282
          %s284 = sshll.u32 %s283, 4
          %285 = vsyncadd %s273, %s284
          %p286 = scmp.ne.s32.totalorder 0, %s282
          %s287 = smul.addr %s277, 2
          %s288 = smul.addr %s287, 8
          %s289 = scalar_lea.hbm %s0, %s288
          %s290 = smul.u32 16, %s280
          %s291 = sshll.u32 %s289, 4
          %s292 = int_to_ptr.hbm [resolvable:$true] %s291
          %s293 = sshll.u32 %s276, 4
          %s294 = int_to_ptr.vmem [resolvable:$true] %s293
          %s295 = sshll.u32 %s290, 4
          %299 = dma.hbm_to_vmem [thread:$0]  (%p286), %s292, %s295, %s294, %s273, 256, 256, 16
        $region44: #{tpu_custom_call.1} parent=39 // pred_fallthru
          _
      $region40: #{tpu_custom_call.1} parent=5 // pred_fallthru
        _
      %p300 = scmp.le.s32.totalorder 1, %s21
      %p301 = scmp.lt.s32.totalorder %s21, 3
      %p302 = pnand %p300, %p301
      %p303 = pneg %p302
      // Predicated region
      $region45: #{tpu_custom_call.1} parent=5 // pred_check
        _
      $region46: #{tpu_custom_call.1} parent=5 // pred_check_branch
        %305 = sbr.rel (%p302) target = $region48
      $region47: #{tpu_custom_call.1} parent=5 // pred_region
        %s306 = ssub.s32 %s21, 1
        %s307 = sand.u32 %s34, 1
        %s308 = scalar_lea.sflag [#allocation3], %s307
        %s309 = sand.u32 %s34, 1
        %s310 = smul.addr %s309, 208
        %s311 = scalar_lea.vmem [#allocation2], %s310
        // Predicated region
        $region49: #{tpu_custom_call.1} parent=47 // pred_check
          %p312 = pneg %p47
        $region50: #{tpu_custom_call.1} parent=47 // pred_check_branch
          %314 = sbr.rel (%p312) target = $region52
        $region51: #{tpu_custom_call.1} parent=47 // pred_region
          %316 = dma.done %s308, 3328
        $region52: #{tpu_custom_call.1} parent=47 // pred_fallthru
          _
        // Predicated region
        $region53: #{tpu_custom_call.1} parent=47 // pred_check
          %p317 = pneg %p68
        $region54: #{tpu_custom_call.1} parent=47 // pred_check_branch
          %319 = sbr.rel (%p317) target = $region56
        $region55: #{tpu_custom_call.1} parent=47 // pred_region
          %321 = dma.done [#allocation6], 1600
        $region56: #{tpu_custom_call.1} parent=47 // pred_fallthru
          _
        // Predicated region
        $region57: #{tpu_custom_call.1} parent=47 // pred_check
          %p322 = pneg %p110
        $region58: #{tpu_custom_call.1} parent=47 // pred_check_branch
          %324 = sbr.rel (%p322) target = $region60
        $region59: #{tpu_custom_call.1} parent=47 // pred_region
          %326 = dma.done [#allocation6], 2048
        $region60: #{tpu_custom_call.1} parent=47 // pred_fallthru
          _
        // Predicated region
        $region61: #{tpu_custom_call.1} parent=47 // pred_check
          %p327 = pneg %p152
        $region62: #{tpu_custom_call.1} parent=47 // pred_check_branch
          %329 = sbr.rel (%p327) target = $region64
        $region63: #{tpu_custom_call.1} parent=47 // pred_region
          %331 = dma.done [#allocation9], 2048
        $region64: #{tpu_custom_call.1} parent=47 // pred_fallthru
          _
        %s332 = sand.u32 %s34, 1
        %s333 = scalar_lea.sflag [#allocation3], %s332
        %s334 = sand.u32 %s34, 1
        %s335 = smul.addr %s334, 208
        %s336 = scalar_lea.vmem [#allocation2], %s335
        %p337 = pneg %p47
        %p338 = pneg %p44
        %p339 = pneg %p68
        %p340 = pneg %p65
        %p341 = pneg %p89
        %p342 = pneg %p86
        %p343 = pneg %p110
        %p344 = pneg %p107
        %p345 = pneg %p131
        %p346 = pneg %p128
        %p347 = pneg %p152
        %p348 = pneg %p149
        %p349 = pneg %p173
        %p350 = pneg %p170
        %p351 = pneg %p199
        %p352 = pneg %p196
        %s353 = sand.u32 %s186, 1
        %s354 = scalar_lea.sflag [#allocation4], %s353
        %s355 = sand.u32 %s186, 1
        %s356 = smul.addr %s355, 104
        %s357 = scalar_lea.vmem [#allocation10], %s356
        %s358 = smul.u32 13, %s26
        %s359 = ssub.s32 25, %s358
        %p360 = scmp.lt.s32.totalorder %s359, 13
        %s361 = scalar_select %p360, %s359, 13
        %s362 = smul.u32 8, %s361
        %s363 = smul.u32 %s362, 2
        %s364 = smul.u32 13, %s26
        %s365 = ssub.s32 25, %s364
        %p366 = scmp.lt.s32.totalorder %s365, 13
        %s367 = scalar_select %p366, %s365, 13
        %s368 = smul.u32 8, %s367
        %v370 = vld [vmem:[%s311] sm:$0xff]
        %v371 = vld [vmem:[%s311 + $0x8] sm:$0xff]
        %v372 = vld [vmem:[%s311 + $0x10] sm:$0xff]
        %v373 = vld [vmem:[%s311 + $0x18] sm:$0xff]
        %v374 = vld [vmem:[%s311 + $0x20] sm:$0xff]
        %v375 = vld [vmem:[%s311 + $0x28] sm:$0xff]
        %v376 = vld [vmem:[%s311 + $0x30] sm:$0xff]
        %v377 = vld [vmem:[%s311 + $0x38] sm:$0xff]
        %v378 = vld [vmem:[%s311 + $0x40] sm:$0xff]
        %v379 = vld [vmem:[%s311 + $0x48] sm:$0xff]
        %v380 = vld [vmem:[%s311 + $0x50] sm:$0xff]
        %v381 = vld [vmem:[%s311 + $0x58] sm:$0xff]
        %v382 = vld [vmem:[%s311 + $0x60] sm:$0xff]
        %v383 = vld [vmem:[%s311 + $0x68] sm:$0xff]
        %v384 = vld [vmem:[%s311 + $0x70] sm:$0xff]
        %v385 = vld [vmem:[%s311 + $0x78] sm:$0xff]
        %v386 = vld [vmem:[%s311 + $0x80] sm:$0xff]
        %v387 = vld [vmem:[%s311 + $0x88] sm:$0xff]
        %v388 = vld [vmem:[%s311 + $0x90] sm:$0xff]
        %v389 = vld [vmem:[%s311 + $0x98] sm:$0xff]
        %v390 = vld [vmem:[%s311 + $0xa0] sm:$0xff]
        %v391 = vld [vmem:[%s311 + $0xa8] sm:$0xff]
        %v392 = vld [vmem:[%s311 + $0xb0] sm:$0xff]
        %v393 = vld [vmem:[%s311 + $0xb8] sm:$0xff]
        %v394 = vld [vmem:[%s311 + $0xc0] sm:$0xff]
        %v395 = vld [vmem:[%s311 + $0xc8] sm:$0xff]
        %v396 = vpack.c.bf16 %v372, %v370
        %v397 = vpack.c.bf16 %v373, %v371
        %v398 = vpack.c.bf16 %v376, %v374
        %v399 = vpack.c.bf16 %v377, %v375
        %v400 = vpack.c.bf16 %v380, %v378
        %v401 = vpack.c.bf16 %v381, %v379
        %v402 = vpack.c.bf16 %v384, %v382
        %v403 = vpack.c.bf16 %v385, %v383
        %v404 = vpack.c.bf16 %v388, %v386
        %v405 = vpack.c.bf16 %v389, %v387
        %v406 = vpack.c.bf16 %v392, %v390
        %v407 = vpack.c.bf16 %v393, %v391
        %v408 = vpack.c.bf16 %v394, %v394
        %v409 = vpack.c.bf16 %v395, %v395
        %v410 = vld [vmem:[#allocation5] sm:$0xf]
        %v411 = vld [vmem:[#allocation5 + $0x4] sm:$0xf]
        %v412 = vld [vmem:[#allocation5 + $0x8] sm:$0xf]
        %v413 = vld [vmem:[#allocation5 + $0xc] sm:$0xf]
        %v414 = vld [vmem:[#allocation5 + $0x10] sm:$0xf]
        %v415 = vld [vmem:[#allocation5 + $0x14] sm:$0xf]
        %v416 = vld [vmem:[#allocation5 + $0x18] sm:$0xf]
        %v417 = vld [vmem:[#allocation5 + $0x1c] sm:$0xf]
        %v418 = vld [vmem:[#allocation5 + $0x20] sm:$0xf]
        %v419 = vld [vmem:[#allocation5 + $0x24] sm:$0xf]
        %v420 = vld [vmem:[#allocation5 + $0x28] sm:$0xf]
        %v421 = vld [vmem:[#allocation5 + $0x2c] sm:$0xf]
        %v422 = vld [vmem:[#allocation5 + $0x30] sm:$0xf]
        %v423 = vld [vmem:[#allocation5 + $0x34] sm:$0xf]
        %v424 = vld [vmem:[#allocation5 + $0x38] sm:$0xf]
        %v425 = vld [vmem:[#allocation5 + $0x3c] sm:$0xf]
        %v426 = vld [vmem:[#allocation5 + $0x40] sm:$0xf]
        %v427 = vld [vmem:[#allocation5 + $0x44] sm:$0xf]
        %v428 = vld [vmem:[#allocation5 + $0x48] sm:$0xf]
        %v429 = vld [vmem:[#allocation5 + $0x4c] sm:$0xf]
        %v430 = vld [vmem:[#allocation5 + $0x50] sm:$0xf]
        %v431 = vld [vmem:[#allocation5 + $0x54] sm:$0xf]
        %v432 = vld [vmem:[#allocation5 + $0x58] sm:$0xf]
        %v433 = vld [vmem:[#allocation5 + $0x5c] sm:$0xf]
        %v434 = vld [vmem:[#allocation5 + $0x60] sm:$0xf]
        %v435 = vld [vmem:[%s2] sm:$0x1]
        %v437 = vperm.slane %v435, 0
        %v464 = vunpack.c.l.b16 %v410
        %v465 = vunpack.c.l.b16 %v411
        %v466 = vunpack.c.l.b16 %v412
        %v467 = vunpack.c.l.b16 %v413
        %v468 = vunpack.c.l.b16 %v414
        %v469 = vunpack.c.l.b16 %v415
        %v470 = vunpack.c.l.b16 %v416
        %v471 = vunpack.c.l.b16 %v417
        %v472 = vunpack.c.l.b16 %v418
        %v473 = vunpack.c.l.b16 %v419
        %v474 = vunpack.c.l.b16 %v420
        %v475 = vunpack.c.l.b16 %v421
        %v476 = vunpack.c.l.b16 %v422
        %v477 = vunpack.c.l.b16 %v423
        %v478 = vunpack.c.l.b16 %v424
        %v479 = vunpack.c.l.b16 %v425
        %v480 = vunpack.c.l.b16 %v426
        %v481 = vunpack.c.l.b16 %v427
        %v482 = vunpack.c.l.b16 %v428
        %v483 = vunpack.c.l.b16 %v429
        %v484 = vunpack.c.l.b16 %v430
        %v485 = vunpack.c.l.b16 %v431
        %v486 = vunpack.c.l.b16 %v432
        %v487 = vunpack.c.l.b16 %v433
        %v488 = vunpack.c.l.b16 %v434
        %v489 = vpack.c.b16 %v465, %v464
        %v490 = vpack.c.b16 %v467, %v466
        %v491 = vpack.c.b16 %v469, %v468
        %v492 = vpack.c.b16 %v471, %v470
        %v493 = vpack.c.b16 %v473, %v472
        %v494 = vpack.c.b16 %v475, %v474
        %v495 = vpack.c.b16 %v477, %v476
        %v496 = vpack.c.b16 %v479, %v478
        %v497 = vpack.c.b16 %v481, %v480
        %v498 = vpack.c.b16 %v483, %v482
        %v499 = vpack.c.b16 %v485, %v484
        %v500 = vpack.c.b16 %v487, %v486
        %v501 = vpack.c.b16 %v488, %v488
        %vm514 = vcmask 588800
        %v516 = vsel %vm514, %v397, 0
        %v519 = vsel %vm514, %v399, 0
        %v522 = vsel %vm514, %v401, 0
        %v525 = vsel %vm514, %v403, 0
        %v528 = vsel %vm514, %v405, 0
        %v531 = vsel %vm514, %v407, 0
        %v534 = vsel %vm514, %v409, 0
        %vm536 = vcmask 1043456
        %v538 = vsel %vm536, %v501, 0
        %540 = vmatpush.bf16.msra.mxu0 %v496
        %541 = vmatpush.bf16.msra.mxu0 %v495
        %542 = vmatpush.bf16.msra.mxu0 %v494
        %543 = vmatpush.bf16.msra.mxu0 %v493
        %544 = vmatpush.bf16.msra.mxu0 %v492
        %545 = vmatpush.bf16.msra.mxu0 %v491
        %546 = vmatpush.bf16.msra.mxu0 %v490
        %547 = vmatpush.bf16.msra.mxu0 %v489
        %548 = vmatmul.bf16.gmra.mxu0 %v396
        %v549 = vpop.f32.mrf.mxu0
        %v550 = vadd.f32 %v437, %v549
        %v551 = vpop.f32.mrf.mxu0
        %v552 = vadd.f32 %v437, %v551
        %553 = vmatmul.bf16.gmra.mxu0 %v398
        %v554 = vpop.f32.mrf.mxu0
        %v555 = vadd.f32 %v437, %v554
        %v556 = vpop.f32.mrf.mxu0
        %v557 = vadd.f32 %v437, %v556
        %558 = vmatmul.bf16.gmra.mxu0 %v400
        %v559 = vpop.f32.mrf.mxu0
        %v560 = vadd.f32 %v437, %v559
        %v561 = vpop.f32.mrf.mxu0
        %v562 = vadd.f32 %v437, %v561
        %563 = vmatmul.bf16.gmra.mxu0 %v402
        %v564 = vpop.f32.mrf.mxu0
        %v565 = vadd.f32 %v437, %v564
        %v566 = vpop.f32.mrf.mxu0
        %v567 = vadd.f32 %v437, %v566
        %568 = vmatmul.bf16.gmra.mxu0 %v404
        %v569 = vpop.f32.mrf.mxu0
        %v570 = vadd.f32 %v437, %v569
        %v571 = vpop.f32.mrf.mxu0
        %v572 = vadd.f32 %v437, %v571
        %573 = vmatmul.bf16.gmra.mxu0 %v406
        %v574 = vpop.f32.mrf.mxu0
        %v575 = vadd.f32 %v437, %v574
        %v576 = vpop.f32.mrf.mxu0
        %v577 = vadd.f32 %v437, %v576
        %578 = vmatmul.bf16.gmra.mxu0 %v408
        %v579 = vpop.f32.mrf.mxu0
        %v580 = vadd.f32 %v437, %v579
        %v581 = vpop.f32.mrf.mxu0
        %582 = vdwg.mxu0
        %583 = vmatpush.bf16.msra.mxu0 0
        %584 = vmatpush.bf16.msra.mxu0 0
        %585 = vmatpush.bf16.msra.mxu0 0
        %586 = vmatpush.bf16.msra.mxu0 %v538
        %587 = vmatpush.bf16.msra.mxu0 %v500
        %588 = vmatpush.bf16.msra.mxu0 %v499
        %589 = vmatpush.bf16.msra.mxu0 %v498
        %590 = vmatpush.bf16.msra.mxu0 %v497
        %591 = vmatmul.bf16.gmra.mxu0 %v516
        %v592 = vpop.f32.mrf.mxu0
        %v593 = vadd.f32 %v550, %v592
        %v594 = vpop.f32.mrf.mxu0
        %v595 = vadd.f32 %v552, %v594
        %596 = vmatmul.bf16.gmra.mxu0 %v519
        %v597 = vpop.f32.mrf.mxu0
        %v598 = vadd.f32 %v555, %v597
        %v599 = vpop.f32.mrf.mxu0
        %v600 = vadd.f32 %v557, %v599
        %601 = vmatmul.bf16.gmra.mxu0 %v522
        %v602 = vpop.f32.mrf.mxu0
        %v603 = vadd.f32 %v560, %v602
        %v604 = vpop.f32.mrf.mxu0
        %v605 = vadd.f32 %v562, %v604
        %606 = vmatmul.bf16.gmra.mxu0 %v525
        %v607 = vpop.f32.mrf.mxu0
        %v608 = vadd.f32 %v565, %v607
        %v609 = vpop.f32.mrf.mxu0
        %v610 = vadd.f32 %v567, %v609
        %611 = vmatmul.bf16.gmra.mxu0 %v528
        %v612 = vpop.f32.mrf.mxu0
        %v613 = vadd.f32 %v570, %v612
        %v614 = vpop.f32.mrf.mxu0
        %v615 = vadd.f32 %v572, %v614
        %616 = vmatmul.bf16.gmra.mxu0 %v531
        %v617 = vpop.f32.mrf.mxu0
        %v618 = vadd.f32 %v575, %v617
        %v619 = vpop.f32.mrf.mxu0
        %v620 = vadd.f32 %v577, %v619
        %621 = vmatmul.bf16.gmra.mxu0 %v534
        %v622 = vpop.f32.mrf.mxu0
        %v623 = vadd.f32 %v580, %v622
        %v624 = vpop.f32.mrf.mxu0
        %625 = vdwg.mxu0
        %v626 = vmax.f32 %v593, 0.0
        %v627 = vmax.f32 %v595, 0.0
        %v628 = vmax.f32 %v598, 0.0
        %v629 = vmax.f32 %v600, 0.0
        %v630 = vmax.f32 %v603, 0.0
        %v631 = vmax.f32 %v605, 0.0
        %v632 = vmax.f32 %v608, 0.0
        %v633 = vmax.f32 %v610, 0.0
        %v634 = vmax.f32 %v613, 0.0
        %v635 = vmax.f32 %v615, 0.0
        %v636 = vmax.f32 %v618, 0.0
        %v637 = vmax.f32 %v620, 0.0
        %v638 = vmax.f32 %v623, 0.0
        %v639 = vld [vmem:[#allocation7] sm:$0xff]
        %v640 = vld [vmem:[#allocation7 + $0x8] sm:$0xff]
        %v641 = vld [vmem:[#allocation7 + $0x10] sm:$0xff]
        %v642 = vld [vmem:[#allocation7 + $0x18] sm:$0xff]
        %v643 = vld [vmem:[#allocation7 + $0x20] sm:$0xff]
        %v644 = vld [vmem:[#allocation7 + $0x28] sm:$0xff]
        %v645 = vld [vmem:[#allocation7 + $0x30] sm:$0xff]
        %v646 = vld [vmem:[#allocation7 + $0x38] sm:$0xff]
        %v647 = vld [vmem:[#allocation7 + $0x40] sm:$0xff]
        %v648 = vld [vmem:[#allocation7 + $0x48] sm:$0xff]
        %v649 = vld [vmem:[#allocation7 + $0x50] sm:$0xff]
        %v650 = vld [vmem:[#allocation7 + $0x58] sm:$0xff]
        %v651 = vld [vmem:[#allocation7 + $0x60] sm:$0xff]
        %v652 = vld [vmem:[#allocation7 + $0x68] sm:$0xff]
        %v653 = vld [vmem:[#allocation7 + $0x70] sm:$0xff]
        %v654 = vld [vmem:[#allocation7 + $0x78] sm:$0xff]
        %v655 = vld [vmem:[%s4] sm:$0x1]
        %v657 = vperm.slane %v655, 0
        %659 = vmatpush.msra.mxu0 %v654
        %660 = vmatpush.msra.mxu0 %v653
        %661 = vmatpush.msra.mxu0 %v652
        %662 = vmatpush.msra.mxu0 %v651
        %663 = vmatpush.msra.mxu0 %v650
        %664 = vmatpush.msra.mxu0 %v649
        %665 = vmatpush.msra.mxu0 %v648
        %666 = vmatpush.msra.mxu0 %v647
        %667 = vmatpush.msra.mxu0 %v646
        %668 = vmatpush.msra.mxu0 %v645
        %669 = vmatpush.msra.mxu0 %v644
        %670 = vmatpush.msra.mxu0 %v643
        %671 = vmatpush.msra.mxu0 %v642
        %672 = vmatpush.msra.mxu0 %v641
        %673 = vmatpush.msra.mxu0 %v640
        %674 = vmatpush.msra.mxu0 %v639
        %675 = vmatmul.f32.gmra.mxu0 %v626
        %v676 = vpop.f32.mrf.mxu0
        %v677 = vadd.f32 %v657, %v676
        %678 = vmatmul.f32.gmra.mxu0 %v627
        %v679 = vpop.f32.mrf.mxu0
        %v680 = vadd.f32 %v657, %v679
        %681 = vmatmul.f32.gmra.mxu0 %v628
        %v682 = vpop.f32.mrf.mxu0
        %v683 = vadd.f32 %v657, %v682
        %684 = vmatmul.f32.gmra.mxu0 %v629
        %v685 = vpop.f32.mrf.mxu0
        %v686 = vadd.f32 %v657, %v685
        %687 = vmatmul.f32.gmra.mxu0 %v630
        %v688 = vpop.f32.mrf.mxu0
        %v689 = vadd.f32 %v657, %v688
        %690 = vmatmul.f32.gmra.mxu0 %v631
        %v691 = vpop.f32.mrf.mxu0
        %v692 = vadd.f32 %v657, %v691
        %693 = vmatmul.f32.gmra.mxu0 %v632
        %v694 = vpop.f32.mrf.mxu0
        %v695 = vadd.f32 %v657, %v694
        %696 = vmatmul.f32.gmra.mxu0 %v633
        %v697 = vpop.f32.mrf.mxu0
        %v698 = vadd.f32 %v657, %v697
        %699 = vmatmul.f32.gmra.mxu0 %v634
        %v700 = vpop.f32.mrf.mxu0
        %v701 = vadd.f32 %v657, %v700
        %702 = vmatmul.f32.gmra.mxu0 %v635
        %v703 = vpop.f32.mrf.mxu0
        %v704 = vadd.f32 %v657, %v703
        %705 = vmatmul.f32.gmra.mxu0 %v636
        %v706 = vpop.f32.mrf.mxu0
        %v707 = vadd.f32 %v657, %v706
        %708 = vmatmul.f32.gmra.mxu0 %v637
        %v709 = vpop.f32.mrf.mxu0
        %v710 = vadd.f32 %v657, %v709
        %711 = vmatmul.f32.gmra.mxu0 %v638
        %v712 = vpop.f32.mrf.mxu0
        %v713 = vadd.f32 %v657, %v712
        %714 = vdwg.mxu0
        %v715 = vmax.f32 %v677, 0.0
        %v716 = vmax.f32 %v680, 0.0
        %v717 = vmax.f32 %v683, 0.0
        %v718 = vmax.f32 %v686, 0.0
        %v719 = vmax.f32 %v689, 0.0
        %v720 = vmax.f32 %v692, 0.0
        %v721 = vmax.f32 %v695, 0.0
        %v722 = vmax.f32 %v698, 0.0
        %v723 = vmax.f32 %v701, 0.0
        %v724 = vmax.f32 %v704, 0.0
        %v725 = vmax.f32 %v707, 0.0
        %v726 = vmax.f32 %v710, 0.0
        %v727 = vmax.f32 %v713, 0.0
        %v728 = vld [vmem:[#allocation8] sm:$0xff]
        %v729 = vld [vmem:[#allocation8 + $0x8] sm:$0xff]
        %v730 = vld [vmem:[#allocation8 + $0x10] sm:$0xff]
        %v731 = vld [vmem:[#allocation8 + $0x18] sm:$0xff]
        %v732 = vld [vmem:[#allocation8 + $0x20] sm:$0xff]
        %v733 = vld [vmem:[#allocation8 + $0x28] sm:$0xff]
        %v734 = vld [vmem:[#allocation8 + $0x30] sm:$0xff]
        %v735 = vld [vmem:[#allocation8 + $0x38] sm:$0xff]
        %v736 = vld [vmem:[#allocation8 + $0x40] sm:$0xff]
        %v737 = vld [vmem:[#allocation8 + $0x48] sm:$0xff]
        %v738 = vld [vmem:[#allocation8 + $0x50] sm:$0xff]
        %v739 = vld [vmem:[#allocation8 + $0x58] sm:$0xff]
        %v740 = vld [vmem:[#allocation8 + $0x60] sm:$0xff]
        %v741 = vld [vmem:[#allocation8 + $0x68] sm:$0xff]
        %v742 = vld [vmem:[#allocation8 + $0x70] sm:$0xff]
        %v743 = vld [vmem:[#allocation8 + $0x78] sm:$0xff]
        %v744 = vld [vmem:[%s6] sm:$0x1]
        %v746 = vperm.slane %v744, 0
        %748 = vmatpush.msra.mxu0 %v743
        %749 = vmatpush.msra.mxu0 %v742
        %750 = vmatpush.msra.mxu0 %v741
        %751 = vmatpush.msra.mxu0 %v740
        %752 = vmatpush.msra.mxu0 %v739
        %753 = vmatpush.msra.mxu0 %v738
        %754 = vmatpush.msra.mxu0 %v737
        %755 = vmatpush.msra.mxu0 %v736
        %756 = vmatpush.msra.mxu0 %v735
        %757 = vmatpush.msra.mxu0 %v734
        %758 = vmatpush.msra.mxu0 %v733
        %759 = vmatpush.msra.mxu0 %v732
        %760 = vmatpush.msra.mxu0 %v731
        %761 = vmatpush.msra.mxu0 %v730
        %762 = vmatpush.msra.mxu0 %v729
        %763 = vmatpush.msra.mxu0 %v728
        %764 = vmatmul.f32.gmra.mxu0 %v715
        %v765 = vpop.f32.mrf.mxu0
        %v766 = vadd.f32 %v746, %v765
        %767 = vmatmul.f32.gmra.mxu0 %v716
        %v768 = vpop.f32.mrf.mxu0
        %v769 = vadd.f32 %v746, %v768
        %770 = vmatmul.f32.gmra.mxu0 %v717
        %v771 = vpop.f32.mrf.mxu0
        %v772 = vadd.f32 %v746, %v771
        %773 = vmatmul.f32.gmra.mxu0 %v718
        %v774 = vpop.f32.mrf.mxu0
        %v775 = vadd.f32 %v746, %v774
        %776 = vmatmul.f32.gmra.mxu0 %v719
        %v777 = vpop.f32.mrf.mxu0
        %v778 = vadd.f32 %v746, %v777
        %779 = vmatmul.f32.gmra.mxu0 %v720
        %v780 = vpop.f32.mrf.mxu0
        %v781 = vadd.f32 %v746, %v780
        %782 = vmatmul.f32.gmra.mxu0 %v721
        %v783 = vpop.f32.mrf.mxu0
        %v784 = vadd.f32 %v746, %v783
        %785 = vmatmul.f32.gmra.mxu0 %v722
        %v786 = vpop.f32.mrf.mxu0
        %v787 = vadd.f32 %v746, %v786
        %788 = vmatmul.f32.gmra.mxu0 %v723
        %v789 = vpop.f32.mrf.mxu0
        %v790 = vadd.f32 %v746, %v789
        %791 = vmatmul.f32.gmra.mxu0 %v724
        %v792 = vpop.f32.mrf.mxu0
        %v793 = vadd.f32 %v746, %v792
        %794 = vmatmul.f32.gmra.mxu0 %v725
        %v795 = vpop.f32.mrf.mxu0
        %v796 = vadd.f32 %v746, %v795
        %797 = vmatmul.f32.gmra.mxu0 %v726
        %v798 = vpop.f32.mrf.mxu0
        %v799 = vadd.f32 %v746, %v798
        %800 = vmatmul.f32.gmra.mxu0 %v727
        %v801 = vpop.f32.mrf.mxu0
        %v802 = vadd.f32 %v746, %v801
        %803 = vdwg.mxu0
        %v804 = vmul.f32 %v766, 0.5
        %v805 = vmul.f32 %v769, 0.5
        %v806 = vmul.f32 %v772, 0.5
        %v807 = vmul.f32 %v775, 0.5
        %v808 = vmul.f32 %v778, 0.5
        %v809 = vmul.f32 %v781, 0.5
        %v810 = vmul.f32 %v784, 0.5
        %v811 = vmul.f32 %v787, 0.5
        %v812 = vmul.f32 %v790, 0.5
        %v813 = vmul.f32 %v793, 0.5
        %v814 = vmul.f32 %v796, 0.5
        %v815 = vmul.f32 %v799, 0.5
        %v816 = vmul.f32 %v802, 0.5
        %v817 = vtanh.pop %v804
        %v818 = vtanh.pop %v805
        %v819 = vtanh.pop %v806
        %v820 = vtanh.pop %v807
        %v821 = vtanh.pop %v808
        %v822 = vtanh.pop %v809
        %v823 = vtanh.pop %v810
        %v824 = vtanh.pop %v811
        %v825 = vtanh.pop %v812
        %v826 = vtanh.pop %v813
        %v827 = vtanh.pop %v814
        %v828 = vtanh.pop %v815
        %v829 = vtanh.pop %v816
        %v830 = vmul.f32 %v817, 3.0
        %v831 = vmul.f32 %v818, 3.0
        %v832 = vmul.f32 %v819, 3.0
        %v833 = vmul.f32 %v820, 3.0
        %v834 = vmul.f32 %v821, 3.0
        %v835 = vmul.f32 %v822, 3.0
        %v836 = vmul.f32 %v823, 3.0
        %v837 = vmul.f32 %v824, 3.0
        %v838 = vmul.f32 %v825, 3.0
        %v839 = vmul.f32 %v826, 3.0
        %v840 = vmul.f32 %v827, 3.0
        %v841 = vmul.f32 %v828, 3.0
        %v842 = vmul.f32 %v829, 3.0
        %843 = vst [vmem:[%s357] sm:$0xff] %v830
        %844 = vst [vmem:[%s357 + $0x8] sm:$0xff] %v831
        %845 = vst [vmem:[%s357 + $0x10] sm:$0xff] %v832
        %846 = vst [vmem:[%s357 + $0x18] sm:$0xff] %v833
        %847 = vst [vmem:[%s357 + $0x20] sm:$0xff] %v834
        %848 = vst [vmem:[%s357 + $0x28] sm:$0xff] %v835
        %849 = vst [vmem:[%s357 + $0x30] sm:$0xff] %v836
        %850 = vst [vmem:[%s357 + $0x38] sm:$0xff] %v837
        %851 = vst [vmem:[%s357 + $0x40] sm:$0xff] %v838
        %852 = vst [vmem:[%s357 + $0x48] sm:$0xff] %v839
        %853 = vst [vmem:[%s357 + $0x50] sm:$0xff] %v840
        %854 = vst [vmem:[%s357 + $0x58] sm:$0xff] %v841
        %855 = vst [vmem:[%s357 + $0x60] sm:$0xff] %v842
        %s856 = sand.u32 %s186, 1
        %s857 = scalar_lea.sflag [#allocation4], %s856
        %s858 = sand.u32 %s186, 1
        %s859 = smul.addr %s858, 104
        %s860 = scalar_lea.vmem [#allocation10], %s859
        // Predicated region
        $region65: #{tpu_custom_call.1} parent=47 // pred_check
          %p861 = pneg %p196
        $region66: #{tpu_custom_call.1} parent=47 // pred_check_branch
          %863 = sbr.rel (%p861) target = $region68
        $region67: #{tpu_custom_call.1} parent=47 // pred_region
          %s864 = smul.u32 13, %s26
          %s865 = ssub.s32 25, %s864
          %p866 = scmp.lt.s32.totalorder %s865, 13
          %s867 = scalar_select %p866, %s865, 13
          %s868 = smul.u32 8, %s867
          %s869 = ssub.s32 104, %s868
          %s870 = sshll.u32 %s869, 4
          %871 = vsyncadd %s857, %s870
          %p872 = scmp.ne.s32.totalorder 0, %s868
          %s873 = smul.addr %s864, 8
          %s874 = scalar_lea.hbm %s7, %s873
          %s875 = smul.u32 8, %s867
          %s876 = sshll.u32 %s860, 4
          %s877 = int_to_ptr.vmem [resolvable:$true] %s876
          %s878 = sshll.u32 %s874, 4
          %s879 = int_to_ptr.hbm [resolvable:$true] %s878
          %s880 = sshll.u32 %s875, 4
          %884 = dma.vmem_to_hbm [thread:$0]  (%p872), %s877, %s880, %s879, %s857, 128, 128, 8
        $region68: #{tpu_custom_call.1} parent=47 // pred_fallthru
          _
      $region48: #{tpu_custom_call.1} parent=5 // pred_fallthru
        _
      %p885 = scmp.le.s32.totalorder 2, %s21
      // Predicated region
      $region69: #{tpu_custom_call.1} parent=5 // pred_check
        %p886 = pneg %p885
      $region70: #{tpu_custom_call.1} parent=5 // pred_check_branch
        %888 = sbr.rel (%p886) target = $region72
      $region71: #{tpu_custom_call.1} parent=5 // pred_region
        %s889 = ssub.s32 %s21, 2
        // Predicated region
        $region73: #{tpu_custom_call.1} parent=71 // pred_check
          %p890 = pneg %p202
        $region74: #{tpu_custom_call.1} parent=71 // pred_check_branch
          %892 = sbr.rel (%p890) target = $region76
        $region75: #{tpu_custom_call.1} parent=71 // pred_region
          %s893 = sand.u32 %s187, 1
          %s894 = scalar_lea.sflag [#allocation4], %s893
          %s895 = sand.u32 %s187, 1
          %s896 = smul.addr %s895, 104
          %s897 = scalar_lea.vmem [#allocation10], %s896
          %899 = dma.done %s894, 1664
        $region76: #{tpu_custom_call.1} parent=71 // pred_fallthru
          _
      $region72: #{tpu_custom_call.1} parent=5 // pred_fallthru
        _
    $region6: #{tpu_custom_call.1} parent=1 // loop_footer
      %s25 = sadd.s32 1, %s21
    $region7: #{tpu_custom_call.1} parent=1 // loop_footer_branch
      %20 = sbr.rel target = $region3
    $region8: #{tpu_custom_call.1} parent=1 // loop_exit
      _
    %900 = vsyncpa [#allocation3], 1
    %s901 = scalar_lea.sflag [#allocation3], 1
    %902 = vsyncpa %s901, 1
    %903 = vsyncpa [#allocation6], 1
    %904 = vsyncpa [#allocation9], 1
    %905 = vsyncpa [#allocation4], 1
    %s906 = scalar_lea.sflag [#allocation4], 1
    %907 = vsyncpa %s906, 1

</llo_original>
